<compile_context>
chip_gen: v5e
topology: v5e:2x2
jax: 0.10.0
libtpu: 0.0.40
codegen_flags: <defaults>
</compile_context>

<pallas_src>
import functools

import jax
import jax.numpy as jnp
from jax import lax
from jax.experimental import pallas as pl
from jax.experimental.pallas import tpu as pltpu


def _atrous_conv_bn_relu_kernel(x_ref, w_ref, mask_ref, gamma_ref, beta_ref,
                                o_ref, patch_ref, *,
                                n_batch, cin_pad, kh_sz, kw_sz, dil, wp, howp,
                                count, eps):
    """Fused dilated conv (single matmul) + training-mode BN + ReLU.

    x_ref:     (N, Cin_pad, Lp)          flattened zero-padded NCHW image, bf16
    w_ref:     (Cout, KH*KW*Cin_pad)     weights, tap-major then channel, bf16
    mask_ref:  (1, N*Ho*Wp)              1.0 on valid output columns, f32
    gamma_ref: (Cout, 1) f32             BN affine scale
    beta_ref:  (Cout, 1) f32             BN affine shift
    o_ref:     (Cout, N*Ho*Wp) f32       fused output (Wp row pitch)
    patch_ref: (KH*KW*Cin_pad, N*Ho*Wp)  VMEM im2col scratch, bf16
    """
    # im2col gather: in the row-flattened padded image, tap (kh, kw) is a
    # contiguous lane window of length Ho*Wp starting at kh*d*Wp + kw*d.
    # Every destination slice starts at a multiple of cin_pad (=16) sublanes,
    # so the bf16 packed stores are fully tile-aligned.
    for kh in range(kh_sz):
        for kw in range(kw_sz):
            t = kh * kw_sz + kw
            off = kh * dil * wp + kw * dil
            for n in range(n_batch):
                patch_ref[t * cin_pad:(t + 1) * cin_pad,
                          n * howp:(n + 1) * howp] = x_ref[n, :, off:off + howp]

    # Single MXU push for the whole batch: (Cout, K) @ (K, N*Ho*Wp), f32 acc.
    y = jnp.dot(w_ref[...], patch_ref[...], preferred_element_type=jnp.float32)

    # Training-mode BatchNorm statistics over the batch (two-pass, f32).
    # The mask zeroes the Wp-pitch padding columns so they do not contribute.
    mask = mask_ref[...]                                     # (1, N*Ho*Wp)
    inv_count = 1.0 / count
    mean = jnp.sum(y * mask, axis=-1, keepdims=True) * inv_count      # (Cout,1)
    centered = (y - mean) * mask
    var = jnp.sum(centered * centered, axis=-1, keepdims=True) * inv_count
    scale = gamma_ref[...] * lax.rsqrt(var + eps)

    # Fused BN apply + ReLU; (8, 640) store is fully lane-dense (5 vregs).
    o_ref[...] = jnp.maximum(centered * scale + beta_ref[...], 0.0)


def atrous_convolution(x_nchw, weight, bias, gamma, beta, *,
                       dilation, padding, eps=1e-5):
    """ReLU(BatchNorm2d(Conv2d(x, dilation, padding))), PyTorch training-mode BN.

    x_nchw: (N, Cin, H, W); weight: (Cout, Cin, KH, KW); bias/gamma/beta: (Cout,)
    Returns (N, Cout, Ho, Wo) float32 (NCHW, same as the PyTorch module).
    """
    # Conv bias cancels exactly under training-mode BN (batch mean absorbs it).
    del bias

    N, Cin, H, W = x_nchw.shape
    Cout, _, KH, KW = weight.shape
    d, p = dilation, padding
    Hp, Wp = H + 2 * p, W + 2 * p
    Ho = Hp - d * (KH - 1)
    Wo = Wp - d * (KW - 1)
    HoWp = Ho * Wp
    NHoWp = N * HoWp
    count = float(N * Ho * Wo)

    # bf16 packs 16 rows per sublane granule -> pad Cin so every im2col tap
    # write lands on a packed-sublane-aligned offset.
    CIN_GRANULE = 16
    Cin_pad = ((Cin + CIN_GRANULE - 1) // CIN_GRANULE) * CIN_GRANULE
    KKCp = KH * KW * Cin_pad
    # One extra zero row of the padded image covers the (KW-1)*d flatten tail,
    # so a SINGLE jnp.pad handles channel pad + spatial pad + tail.
    Lp = (Hp + 1) * Wp

    x_p = jnp.pad(x_nchw.astype(jnp.float32),
                  ((0, 0), (0, Cin_pad - Cin), (p, p + 1), (p, p)))
    x_flat = x_p.reshape(N, Cin_pad, Lp).astype(jnp.bfloat16)

    # (Cout, Cin, KH, KW) -> (Cout, KH*KW*Cin_pad), tap-major then channel.
    w_p = jnp.pad(weight.astype(jnp.float32),
                  ((0, 0), (0, Cin_pad - Cin), (0, 0), (0, 0)))
    w2 = jnp.transpose(w_p, (0, 2, 3, 1)).reshape(Cout, KKCp).astype(jnp.bfloat16)

    # Valid-column mask: 1.0 where (flat_col % Wp) < Wo.
    mask = ((jnp.arange(NHoWp, dtype=jnp.int32) % Wp) < Wo)
    mask = mask.astype(jnp.float32)[None, :]

    kern = functools.partial(
        _atrous_conv_bn_relu_kernel,
        n_batch=N, cin_pad=Cin_pad, kh_sz=KH, kw_sz=KW, dil=d,
        wp=Wp, howp=HoWp, count=count, eps=eps)

    out2d = pl.pallas_call(
        kern,
        out_shape=jax.ShapeDtypeStruct((Cout, NHoWp), jnp.float32),
        grid=(1,),
        in_specs=[pl.BlockSpec((N, Cin_pad, Lp), lambda i: (0, 0, 0)),
                  pl.BlockSpec((Cout, KKCp), lambda i: (0, 0)),
                  pl.BlockSpec((1, NHoWp), lambda i: (0, 0)),
                  pl.BlockSpec((Cout, 1), lambda i: (0, 0)),
                  pl.BlockSpec((Cout, 1), lambda i: (0, 0))],
        out_specs=pl.BlockSpec((Cout, NHoWp), lambda i: (0, 0)),
        scratch_shapes=[pltpu.VMEM((KKCp, NHoWp), jnp.bfloat16)],
        compiler_params=pltpu.CompilerParams(
            dimension_semantics=("arbitrary",)),
    )(x_flat, w2, mask,
      gamma.astype(jnp.float32).reshape(Cout, 1),
      beta.astype(jnp.float32).reshape(Cout, 1))

    # Single fused XLA copy: drop the Wp->Wo pitch padding and swap N/Cout.
    out = out2d.reshape(Cout, N, Ho, Wp)[:, :, :, :Wo]
    return jnp.transpose(out, (1, 0, 2, 3))


if __name__ == "__main__":
    # Module config: input_channel=4, out_channel=8, kernel_size=3, dilated=2, padding=2
    N, Cin, H, W = 2, 4, 16, 16
    Cout, K, dil, pad = 8, 3, 2, 2

    key = jax.random.PRNGKey(0)
    kx, kw, kb = jax.random.split(key, 3)

    x = jax.random.normal(kx, (N, Cin, H, W), dtype=jnp.float32)

    # Deterministic synthetic params (PyTorch shapes: OIHW weight, (Cout,) bias)
    fan_in = Cin * K * K
    bound = 1.0 / float(fan_in) ** 0.5
    weight = jax.random.uniform(kw, (Cout, Cin, K, K), jnp.float32, -bound, bound)
    bias = jax.random.uniform(kb, (Cout,), jnp.float32, -bound, bound)
    gamma = jnp.ones((Cout,), jnp.float32)   # BatchNorm2d default weight
    beta = jnp.zeros((Cout,), jnp.float32)   # BatchNorm2d default bias

    fwd = jax.jit(functools.partial(atrous_convolution, dilation=dil, padding=pad))
    y = fwd(x, weight, bias, gamma, beta)
    jax.block_until_ready(y)

    Ho = H + 2 * pad - dil * (K - 1)
    assert y.shape == (N, Cout, Ho, Ho), y.shape

    def bn_relu_ref(conv):
        m = jnp.mean(conv, axis=(0, 2, 3), keepdims=True)
        v = jnp.mean((conv - m) ** 2, axis=(0, 2, 3), keepdims=True)
        return jnp.maximum(
            (conv - m) * lax.rsqrt(v + 1e-5) * gamma[None, :, None, None]
            + beta[None, :, None, None], 0.0)

    def conv_ref(xx, ww):
        return lax.conv_general_dilated(
            xx, ww, window_strides=(1, 1), padding=((pad, pad), (pad, pad)),
            rhs_dilation=(dil, dil),
            dimension_numbers=("NCHW", "OIHW", "NCHW")) + bias[None, :, None, None]

    # Tight check vs a reference using the same bf16-quantized inputs
    # (isolates kernel structure / BN / ReLU from bf16 input rounding).
    x_q = x.astype(jnp.bfloat16).astype(jnp.float32)
    w_q = weight.astype(jnp.bfloat16).astype(jnp.float32)
    ref_q = bn_relu_ref(conv_ref(x_q, w_q))
    err_q = float(jnp.max(jnp.abs(y - ref_q)))
    assert err_q < 2e-3, f"max abs error vs bf16-input reference: {err_q}"

    # Loose check vs the full-f32 PyTorch-semantics reference (bf16 cast of
    # x/w introduces ~1e-2 max error on the normalized output).
    ref_f = bn_relu_ref(conv_ref(x, weight))
    err_f = float(jnp.max(jnp.abs(y - ref_f)))
    assert err_f < 5e-2, f"max abs error vs f32 reference: {err_f}"

    print("KERNEL_OK")
</pallas_src>

<mosaic_0001>
module attributes {stable_mosaic.version = 11 : i64} {
  func.func @_atrous_conv_bn_relu_kernel(%arg0: i32, %arg1: memref<2x16x420xbf16, #tpu.memory_space<vmem>>, %arg2: memref<8x144xbf16, #tpu.memory_space<vmem>>, %arg3: memref<1x640xf32, #tpu.memory_space<vmem>>, %arg4: memref<8x1xf32, #tpu.memory_space<vmem>>, %arg5: memref<8x1xf32, #tpu.memory_space<vmem>>, %arg6: memref<8x640xf32, #tpu.memory_space<vmem>>, %arg7: memref<144x640xbf16, #tpu.memory_space<vmem>>) attributes {dimension_semantics = [#tpu.dimension_semantics<arbitrary>], iteration_bounds = array<i64: 1>, scalar_prefetch = 0 : i64, scratch_operands = 1 : i64, tpu.core_type = #tpu.core_type<tc>, window_params = [{pipeline_mode = #tpu.pipeline_mode<synchronous>, transform_indices = @transform_0, window_bounds = array<i64: 2, 16, 420>}, {pipeline_mode = #tpu.pipeline_mode<synchronous>, transform_indices = @transform_1, window_bounds = array<i64: 8, 144>}, {pipeline_mode = #tpu.pipeline_mode<synchronous>, transform_indices = @transform_2, window_bounds = array<i64: 1, 640>}, {pipeline_mode = #tpu.pipeline_mode<synchronous>, transform_indices = @transform_3, window_bounds = array<i64: 8, 1>}, {pipeline_mode = #tpu.pipeline_mode<synchronous>, transform_indices = @transform_4, window_bounds = array<i64: 8, 1>}, {pipeline_mode = #tpu.pipeline_mode<synchronous>, transform_indices = @transform_5, window_bounds = array<i64: 8, 640>}]} {
    %c0 = arith.constant 0 : index
    %c0_0 = arith.constant 0 : index
    %c0_1 = arith.constant 0 : index
    %0 = vector.load %arg1[%c0, %c0_0, %c0_1] : memref<2x16x420xbf16, #tpu.memory_space<vmem>>, vector<1x16x320xbf16>
    %1 = vector.shape_cast %0 : vector<1x16x320xbf16> to vector<16x320xbf16>
    %c0_2 = arith.constant 0 : index
    %c0_3 = arith.constant 0 : index
    %2 = vector.load %arg7[%c0_2, %c0_3] : memref<144x640xbf16, #tpu.memory_space<vmem>>, vector<16x320xbf16>
    tpu.vector_store %arg7[%c0_2, %c0_3], %1 {strides = array<i32>} : memref<144x640xbf16, #tpu.memory_space<vmem>>, vector<16x320xbf16>,
    %c1 = arith.constant 1 : index
    %c0_4 = arith.constant 0 : index
    %c0_5 = arith.constant 0 : index
    %3 = vector.load %arg1[%c1, %c0_4, %c0_5] : memref<2x16x420xbf16, #tpu.memory_space<vmem>>, vector<1x16x320xbf16>
    %4 = vector.shape_cast %3 : vector<1x16x320xbf16> to vector<16x320xbf16>
    %c0_6 = arith.constant 0 : index
    %c320 = arith.constant 320 : index
    %5 = vector.load %arg7[%c0_6, %c320] : memref<144x640xbf16, #tpu.memory_space<vmem>>, vector<16x320xbf16>
    tpu.vector_store %arg7[%c0_6, %c320], %4 {strides = array<i32>} : memref<144x640xbf16, #tpu.memory_space<vmem>>, vector<16x320xbf16>,
    %c0_7 = arith.constant 0 : index
    %c0_8 = arith.constant 0 : index
    %c2 = arith.constant 2 : index
    %6 = vector.load %arg1[%c0_7, %c0_8, %c2] : memref<2x16x420xbf16, #tpu.memory_space<vmem>>, vector<1x16x320xbf16>
    %7 = vector.shape_cast %6 : vector<1x16x320xbf16> to vector<16x320xbf16>
    %c16 = arith.constant 16 : index
    %c0_9 = arith.constant 0 : index
    %8 = vector.load %arg7[%c16, %c0_9] : memref<144x640xbf16, #tpu.memory_space<vmem>>, vector<16x320xbf16>
    tpu.vector_store %arg7[%c16, %c0_9], %7 {strides = array<i32>} : memref<144x640xbf16, #tpu.memory_space<vmem>>, vector<16x320xbf16>,
    %c1_10 = arith.constant 1 : index
    %c0_11 = arith.constant 0 : index
    %c2_12 = arith.constant 2 : index
    %9 = vector.load %arg1[%c1_10, %c0_11, %c2_12] : memref<2x16x420xbf16, #tpu.memory_space<vmem>>, vector<1x16x320xbf16>
    %10 = vector.shape_cast %9 : vector<1x16x320xbf16> to vector<16x320xbf16>
    %c16_13 = arith.constant 16 : index
    %c320_14 = arith.constant 320 : index
    %11 = vector.load %arg7[%c16_13, %c320_14] : memref<144x640xbf16, #tpu.memory_space<vmem>>, vector<16x320xbf16>
    tpu.vector_store %arg7[%c16_13, %c320_14], %10 {strides = array<i32>} : memref<144x640xbf16, #tpu.memory_space<vmem>>, vector<16x320xbf16>,
    %c0_15 = arith.constant 0 : index
    %c0_16 = arith.constant 0 : index
    %c4 = arith.constant 4 : index
    %12 = vector.load %arg1[%c0_15, %c0_16, %c4] : memref<2x16x420xbf16, #tpu.memory_space<vmem>>, vector<1x16x320xbf16>
    %13 = vector.shape_cast %12 : vector<1x16x320xbf16> to vector<16x320xbf16>
    %c32 = arith.constant 32 : index
    %c0_17 = arith.constant 0 : index
    %14 = vector.load %arg7[%c32, %c0_17] : memref<144x640xbf16, #tpu.memory_space<vmem>>, vector<16x320xbf16>
    tpu.vector_store %arg7[%c32, %c0_17], %13 {strides = array<i32>} : memref<144x640xbf16, #tpu.memory_space<vmem>>, vector<16x320xbf16>,
    %c1_18 = arith.constant 1 : index
    %c0_19 = arith.constant 0 : index
    %c4_20 = arith.constant 4 : index
    %15 = vector.load %arg1[%c1_18, %c0_19, %c4_20] : memref<2x16x420xbf16, #tpu.memory_space<vmem>>, vector<1x16x320xbf16>
    %16 = vector.shape_cast %15 : vector<1x16x320xbf16> to vector<16x320xbf16>
    %c32_21 = arith.constant 32 : index
    %c320_22 = arith.constant 320 : index
    %17 = vector.load %arg7[%c32_21, %c320_22] : memref<144x640xbf16, #tpu.memory_space<vmem>>, vector<16x320xbf16>
    tpu.vector_store %arg7[%c32_21, %c320_22], %16 {strides = array<i32>} : memref<144x640xbf16, #tpu.memory_space<vmem>>, vector<16x320xbf16>,
    %c0_23 = arith.constant 0 : index
    %c0_24 = arith.constant 0 : index
    %c40 = arith.constant 40 : index
    %18 = vector.load %arg1[%c0_23, %c0_24, %c40] : memref<2x16x420xbf16, #tpu.memory_space<vmem>>, vector<1x16x320xbf16>
    %19 = vector.shape_cast %18 : vector<1x16x320xbf16> to vector<16x320xbf16>
    %c48 = arith.constant 48 : index
    %c0_25 = arith.constant 0 : index
    %20 = vector.load %arg7[%c48, %c0_25] : memref<144x640xbf16, #tpu.memory_space<vmem>>, vector<16x320xbf16>
    tpu.vector_store %arg7[%c48, %c0_25], %19 {strides = array<i32>} : memref<144x640xbf16, #tpu.memory_space<vmem>>, vector<16x320xbf16>,
    %c1_26 = arith.constant 1 : index
    %c0_27 = arith.constant 0 : index
    %c40_28 = arith.constant 40 : index
    %21 = vector.load %arg1[%c1_26, %c0_27, %c40_28] : memref<2x16x420xbf16, #tpu.memory_space<vmem>>, vector<1x16x320xbf16>
    %22 = vector.shape_cast %21 : vector<1x16x320xbf16> to vector<16x320xbf16>
    %c48_29 = arith.constant 48 : index
    %c320_30 = arith.constant 320 : index
    %23 = vector.load %arg7[%c48_29, %c320_30] : memref<144x640xbf16, #tpu.memory_space<vmem>>, vector<16x320xbf16>
    tpu.vector_store %arg7[%c48_29, %c320_30], %22 {strides = array<i32>} : memref<144x640xbf16, #tpu.memory_space<vmem>>, vector<16x320xbf16>,
    %c0_31 = arith.constant 0 : index
    %c0_32 = arith.constant 0 : index
    %c42 = arith.constant 42 : index
    %24 = vector.load %arg1[%c0_31, %c0_32, %c42] : memref<2x16x420xbf16, #tpu.memory_space<vmem>>, vector<1x16x320xbf16>
    %25 = vector.shape_cast %24 : vector<1x16x320xbf16> to vector<16x320xbf16>
    %c64 = arith.constant 64 : index
    %c0_33 = arith.constant 0 : index
    %26 = vector.load %arg7[%c64, %c0_33] : memref<144x640xbf16, #tpu.memory_space<vmem>>, vector<16x320xbf16>
    tpu.vector_store %arg7[%c64, %c0_33], %25 {strides = array<i32>} : memref<144x640xbf16, #tpu.memory_space<vmem>>, vector<16x320xbf16>,
    %c1_34 = arith.constant 1 : index
    %c0_35 = arith.constant 0 : index
    %c42_36 = arith.constant 42 : index
    %27 = vector.load %arg1[%c1_34, %c0_35, %c42_36] : memref<2x16x420xbf16, #tpu.memory_space<vmem>>, vector<1x16x320xbf16>
    %28 = vector.shape_cast %27 : vector<1x16x320xbf16> to vector<16x320xbf16>
    %c64_37 = arith.constant 64 : index
    %c320_38 = arith.constant 320 : index
    %29 = vector.load %arg7[%c64_37, %c320_38] : memref<144x640xbf16, #tpu.memory_space<vmem>>, vector<16x320xbf16>
    tpu.vector_store %arg7[%c64_37, %c320_38], %28 {strides = array<i32>} : memref<144x640xbf16, #tpu.memory_space<vmem>>, vector<16x320xbf16>,
    %c0_39 = arith.constant 0 : index
    %c0_40 = arith.constant 0 : index
    %c44 = arith.constant 44 : index
    %30 = vector.load %arg1[%c0_39, %c0_40, %c44] : memref<2x16x420xbf16, #tpu.memory_space<vmem>>, vector<1x16x320xbf16>
    %31 = vector.shape_cast %30 : vector<1x16x320xbf16> to vector<16x320xbf16>
    %c80 = arith.constant 80 : index
    %c0_41 = arith.constant 0 : index
    %32 = vector.load %arg7[%c80, %c0_41] : memref<144x640xbf16, #tpu.memory_space<vmem>>, vector<16x320xbf16>
    tpu.vector_store %arg7[%c80, %c0_41], %31 {strides = array<i32>} : memref<144x640xbf16, #tpu.memory_space<vmem>>, vector<16x320xbf16>,
    %c1_42 = arith.constant 1 : index
    %c0_43 = arith.constant 0 : index
    %c44_44 = arith.constant 44 : index
    %33 = vector.load %arg1[%c1_42, %c0_43, %c44_44] : memref<2x16x420xbf16, #tpu.memory_space<vmem>>, vector<1x16x320xbf16>
    %34 = vector.shape_cast %33 : vector<1x16x320xbf16> to vector<16x320xbf16>
    %c80_45 = arith.constant 80 : index
    %c320_46 = arith.constant 320 : index
    %35 = vector.load %arg7[%c80_45, %c320_46] : memref<144x640xbf16, #tpu.memory_space<vmem>>, vector<16x320xbf16>
    tpu.vector_store %arg7[%c80_45, %c320_46], %34 {strides = array<i32>} : memref<144x640xbf16, #tpu.memory_space<vmem>>, vector<16x320xbf16>,
    %c0_47 = arith.constant 0 : index
    %c0_48 = arith.constant 0 : index
    %c80_49 = arith.constant 80 : index
    %36 = vector.load %arg1[%c0_47, %c0_48, %c80_49] : memref<2x16x420xbf16, #tpu.memory_space<vmem>>, vector<1x16x320xbf16>
    %37 = vector.shape_cast %36 : vector<1x16x320xbf16> to vector<16x320xbf16>
    %c96 = arith.constant 96 : index
    %c0_50 = arith.constant 0 : index
    %38 = vector.load %arg7[%c96, %c0_50] : memref<144x640xbf16, #tpu.memory_space<vmem>>, vector<16x320xbf16>
    tpu.vector_store %arg7[%c96, %c0_50], %37 {strides = array<i32>} : memref<144x640xbf16, #tpu.memory_space<vmem>>, vector<16x320xbf16>,
    %c1_51 = arith.constant 1 : index
    %c0_52 = arith.constant 0 : index
    %c80_53 = arith.constant 80 : index
    %39 = vector.load %arg1[%c1_51, %c0_52, %c80_53] : memref<2x16x420xbf16, #tpu.memory_space<vmem>>, vector<1x16x320xbf16>
    %40 = vector.shape_cast %39 : vector<1x16x320xbf16> to vector<16x320xbf16>
    %c96_54 = arith.constant 96 : index
    %c320_55 = arith.constant 320 : index
    %41 = vector.load %arg7[%c96_54, %c320_55] : memref<144x640xbf16, #tpu.memory_space<vmem>>, vector<16x320xbf16>
    tpu.vector_store %arg7[%c96_54, %c320_55], %40 {strides = array<i32>} : memref<144x640xbf16, #tpu.memory_space<vmem>>, vector<16x320xbf16>,
    %c0_56 = arith.constant 0 : index
    %c0_57 = arith.constant 0 : index
    %c82 = arith.constant 82 : index
    %42 = vector.load %arg1[%c0_56, %c0_57, %c82] : memref<2x16x420xbf16, #tpu.memory_space<vmem>>, vector<1x16x320xbf16>
    %43 = vector.shape_cast %42 : vector<1x16x320xbf16> to vector<16x320xbf16>
    %c112 = arith.constant 112 : index
    %c0_58 = arith.constant 0 : index
    %44 = vector.load %arg7[%c112, %c0_58] : memref<144x640xbf16, #tpu.memory_space<vmem>>, vector<16x320xbf16>
    tpu.vector_store %arg7[%c112, %c0_58], %43 {strides = array<i32>} : memref<144x640xbf16, #tpu.memory_space<vmem>>, vector<16x320xbf16>,
    %c1_59 = arith.constant 1 : index
    %c0_60 = arith.constant 0 : index
    %c82_61 = arith.constant 82 : index
    %45 = vector.load %arg1[%c1_59, %c0_60, %c82_61] : memref<2x16x420xbf16, #tpu.memory_space<vmem>>, vector<1x16x320xbf16>
    %46 = vector.shape_cast %45 : vector<1x16x320xbf16> to vector<16x320xbf16>
    %c112_62 = arith.constant 112 : index
    %c320_63 = arith.constant 320 : index
    %47 = vector.load %arg7[%c112_62, %c320_63] : memref<144x640xbf16, #tpu.memory_space<vmem>>, vector<16x320xbf16>
    tpu.vector_store %arg7[%c112_62, %c320_63], %46 {strides = array<i32>} : memref<144x640xbf16, #tpu.memory_space<vmem>>, vector<16x320xbf16>,
    %c0_64 = arith.constant 0 : index
    %c0_65 = arith.constant 0 : index
    %c84 = arith.constant 84 : index
    %48 = vector.load %arg1[%c0_64, %c0_65, %c84] : memref<2x16x420xbf16, #tpu.memory_space<vmem>>, vector<1x16x320xbf16>
    %49 = vector.shape_cast %48 : vector<1x16x320xbf16> to vector<16x320xbf16>
    %c128 = arith.constant 128 : index
    %c0_66 = arith.constant 0 : index
    %50 = vector.load %arg7[%c128, %c0_66] : memref<144x640xbf16, #tpu.memory_space<vmem>>, vector<16x320xbf16>
    tpu.vector_store %arg7[%c128, %c0_66], %49 {strides = array<i32>} : memref<144x640xbf16, #tpu.memory_space<vmem>>, vector<16x320xbf16>,
    %c1_67 = arith.constant 1 : index
    %c0_68 = arith.constant 0 : index
    %c84_69 = arith.constant 84 : index
    %51 = vector.load %arg1[%c1_67, %c0_68, %c84_69] : memref<2x16x420xbf16, #tpu.memory_space<vmem>>, vector<1x16x320xbf16>
    %52 = vector.shape_cast %51 : vector<1x16x320xbf16> to vector<16x320xbf16>
    %c128_70 = arith.constant 128 : index
    %c320_71 = arith.constant 320 : index
    %53 = vector.load %arg7[%c128_70, %c320_71] : memref<144x640xbf16, #tpu.memory_space<vmem>>, vector<16x320xbf16>
    tpu.vector_store %arg7[%c128_70, %c320_71], %52 {strides = array<i32>} : memref<144x640xbf16, #tpu.memory_space<vmem>>, vector<16x320xbf16>,
    %c0_72 = arith.constant 0 : index
    %c0_73 = arith.constant 0 : index
    %54 = vector.load %arg2[%c0_72, %c0_73] : memref<8x144xbf16, #tpu.memory_space<vmem>>, vector<8x144xbf16>
    %c0_74 = arith.constant 0 : index
    %c0_75 = arith.constant 0 : index
    %55 = vector.load %arg7[%c0_74, %c0_75] : memref<144x640xbf16, #tpu.memory_space<vmem>>, vector<144x640xbf16>
    %cst = arith.constant dense<0.000000e+00> : vector<8x640xf32>
    %56 = tpu.matmul %54, %55, %cst {dimension_numbers = #tpu.dot_dimension_numbers<[1], [0], [0], [1], [0, 0, 1, 1], [], []>} : vector<8x144xbf16>, vector<144x640xbf16>, vector<8x640xf32> -> vector<8x640xf32>
    %c0_76 = arith.constant 0 : index
    %c0_77 = arith.constant 0 : index
    %57 = vector.load %arg3[%c0_76, %c0_77] : memref<1x640xf32, #tpu.memory_space<vmem>>, vector<1x640xf32>
    %58 = vector.broadcast %57 : vector<1x640xf32> to vector<8x640xf32>
    %59 = arith.mulf %56, %58 : vector<8x640xf32>
    %cst_78 = arith.constant dense<0.000000e+00> : vector<8xf32>
    %60 = vector.multi_reduction <add>, %59, %cst_78 [1] : vector<8x640xf32> to vector<8xf32>
    %61 = vector.shape_cast %60 : vector<8xf32> to vector<8x1xf32>
    %cst_79 = arith.constant 0.001953125 : f32
    %62 = vector.broadcast %cst_79 : f32 to vector<8x1xf32>
    %63 = arith.mulf %61, %62 : vector<8x1xf32>
    %64 = vector.broadcast %63 : vector<8x1xf32> to vector<8x640xf32>
    %65 = arith.subf %56, %64 : vector<8x640xf32>
    %66 = vector.broadcast %57 : vector<1x640xf32> to vector<8x640xf32>
    %67 = arith.mulf %65, %66 : vector<8x640xf32>
    %68 = arith.mulf %67, %67 : vector<8x640xf32>
    %cst_80 = arith.constant dense<0.000000e+00> : vector<8xf32>
    %69 = vector.multi_reduction <add>, %68, %cst_80 [1] : vector<8x640xf32> to vector<8xf32>
    %70 = vector.shape_cast %69 : vector<8xf32> to vector<8x1xf32>
    %cst_81 = arith.constant 0.001953125 : f32
    %71 = vector.broadcast %cst_81 : f32 to vector<8x1xf32>
    %72 = arith.mulf %70, %71 : vector<8x1xf32>
    %c0_82 = arith.constant 0 : index
    %c0_83 = arith.constant 0 : index
    %73 = vector.load %arg4[%c0_82, %c0_83] : memref<8x1xf32, #tpu.memory_space<vmem>>, vector<8x1xf32>
    %cst_84 = arith.constant 9.99999974E-6 : f32
    %74 = vector.broadcast %cst_84 : f32 to vector<8x1xf32>
    %75 = arith.addf %72, %74 : vector<8x1xf32>
    %76 = math.rsqrt %75 : vector<8x1xf32>
    %77 = arith.mulf %73, %76 : vector<8x1xf32>
    %78 = vector.broadcast %77 : vector<8x1xf32> to vector<8x640xf32>
    %79 = arith.mulf %67, %78 : vector<8x640xf32>
    %c0_85 = arith.constant 0 : index
    %c0_86 = arith.constant 0 : index
    %80 = vector.load %arg5[%c0_85, %c0_86] : memref<8x1xf32, #tpu.memory_space<vmem>>, vector<8x1xf32>
    %81 = vector.broadcast %80 : vector<8x1xf32> to vector<8x640xf32>
    %82 = arith.addf %79, %81 : vector<8x640xf32>
    %cst_87 = arith.constant 0.000000e+00 : f32
    %83 = vector.broadcast %cst_87 : f32 to vector<8x640xf32>
    %84 = arith.maximumf %82, %83 : vector<8x640xf32>
    %c0_88 = arith.constant 0 : index
    %c0_89 = arith.constant 0 : index
    %85 = vector.load %arg6[%c0_88, %c0_89] : memref<8x640xf32, #tpu.memory_space<vmem>>, vector<8x640xf32>
    tpu.vector_store %arg6[%c0_88, %c0_89], %84 {strides = array<i32>} : memref<8x640xf32, #tpu.memory_space<vmem>>, vector<8x640xf32>,
    return
  }
  func.func @transform_0(%arg0: i32) -> (i32, i32, i32) {
    %c0_i32 = arith.constant 0 : i32
    %c0_i32_0 = arith.constant 0 : i32
    %c0_i32_1 = arith.constant 0 : i32
    %c0_i32_2 = arith.constant 0 : i32
    return %c0_i32, %c0_i32_0, %c0_i32_1 : i32, i32, i32
  }
  func.func @transform_1(%arg0: i32) -> (i32, i32) {
    %c0_i32 = arith.constant 0 : i32
    %c0_i32_0 = arith.constant 0 : i32
    %c0_i32_1 = arith.constant 0 : i32
    return %c0_i32, %c0_i32_0 : i32, i32
  }
  func.func @transform_2(%arg0: i32) -> (i32, i32) {
    %c0_i32 = arith.constant 0 : i32
    %c0_i32_0 = arith.constant 0 : i32
    %c0_i32_1 = arith.constant 0 : i32
    return %c0_i32, %c0_i32_0 : i32, i32
  }
  func.func @transform_3(%arg0: i32) -> (i32, i32) {
    %c0_i32 = arith.constant 0 : i32
    %c0_i32_0 = arith.constant 0 : i32
    %c0_i32_1 = arith.constant 0 : i32
    return %c0_i32, %c0_i32_0 : i32, i32
  }
  func.func @transform_4(%arg0: i32) -> (i32, i32) {
    %c0_i32 = arith.constant 0 : i32
    %c0_i32_0 = arith.constant 0 : i32
    %c0_i32_1 = arith.constant 0 : i32
    return %c0_i32, %c0_i32_0 : i32, i32
  }
  func.func @transform_5(%arg0: i32) -> (i32, i32) {
    %c0_i32 = arith.constant 0 : i32
    %c0_i32_0 = arith.constant 0 : i32
    %c0_i32_1 = arith.constant 0 : i32
    return %c0_i32, %c0_i32_0 : i32, i32
  }
}

</mosaic_0001>

<llo_original>
// kernel: atrous_convolution.1
$region0: #{atrous_convolution.1}
  #allocation0 [shape = 'u32[]', space=smem, size = 0x4, offset = 0x4, fixed_abs, tag = 'smem constant byte address 0x4 - core index']
  #allocation1 [shape = 'u32[72,128]{1,0:T(1,128)}', space=vmem, size = 0x9000, scoped, tag = 'internal scratch']
  #allocation2 [shape = 'bf16[144,640]{1,0:T(8,128)(2,1)}', space=vmem, size = 0x2d000, scoped, tag = 'scratch operand']
  %s0 = inlined_call_operand.vmem [shape: bf16[2,16,420], index: 0, kind: input, shape index: {}]
  %s1 = inlined_call_operand.vmem [shape: bf16[8,144], index: 1, kind: input, shape index: {}]
  %s2 = inlined_call_operand.vmem [shape: f32[1,640], index: 2, kind: input, shape index: {}]
  %s3 = inlined_call_operand.vmem [shape: f32[8,1], index: 3, kind: input, shape index: {}]
  %s4 = inlined_call_operand.vmem [shape: f32[8,1], index: 4, kind: input, shape index: {}]
  %s5 = inlined_call_operand.vmem [shape: f32[8,640], index: 5, kind: output, shape index: {}]
  %s6 = sld [smem:[#allocation0]]
  $region30: #{atrous_convolution.1} parent=0
    _
  %s8 = ssub.s32 1, %s6
  %s9 = scalar_select 0, %s8, %s6
  // Predicated region
  $region2: #{atrous_convolution.1} parent=0 // pred_check
    _
  $region3: #{atrous_convolution.1} parent=0 // pred_check_branch
    %11 = sbr.rel (0) target = $region5
  $region4: #{atrous_convolution.1} parent=0 // pred_region
    _
  $region5: #{atrous_convolution.1} parent=0 // pred_fallthru
    _
  // Predicated region
  $region6: #{atrous_convolution.1} parent=0 // pred_check
    _
  $region7: #{atrous_convolution.1} parent=0 // pred_check_branch
    %13 = sbr.rel (0) target = $region9
  $region8: #{atrous_convolution.1} parent=0 // pred_region
    _
  $region9: #{atrous_convolution.1} parent=0 // pred_fallthru
    _
  // Predicated region
  $region10: #{atrous_convolution.1} parent=0 // pred_check
    _
  $region11: #{atrous_convolution.1} parent=0 // pred_check_branch
    %15 = sbr.rel (0) target = $region13
  $region12: #{atrous_convolution.1} parent=0 // pred_region
    _
  $region13: #{atrous_convolution.1} parent=0 // pred_fallthru
    _
  // Predicated region
  $region14: #{atrous_convolution.1} parent=0 // pred_check
    _
  $region15: #{atrous_convolution.1} parent=0 // pred_check_branch
    %17 = sbr.rel (0) target = $region17
  $region16: #{atrous_convolution.1} parent=0 // pred_region
    _
  $region17: #{atrous_convolution.1} parent=0 // pred_fallthru
    _
  // Predicated region
  $region18: #{atrous_convolution.1} parent=0 // pred_check
    _
  $region19: #{atrous_convolution.1} parent=0 // pred_check_branch
    %19 = sbr.rel (0) target = $region21
  $region20: #{atrous_convolution.1} parent=0 // pred_region
    _
  $region21: #{atrous_convolution.1} parent=0 // pred_fallthru
    _
  %v21 = vld [vmem:[%s0] sm:$0xff]
  %v22 = vld [vmem:[%s0 + $0x8] sm:$0xf]
  %v23 = vld [vmem:[%s0 + $0x10] sm:$0xff]
  %v24 = vld [vmem:[%s0 + $0x18] sm:$0xf]
  %25 = vst [vmem:[#allocation2] sm:$0xff] %v21
  %vm26 = vcmask 519168
  %27 = vst.msk [vmem:[#allocation2 + $0x8] sm:$0xf] %vm26, %v22
  %28 = vst [vmem:[#allocation2 + $0x14] sm:$0xff] %v23
  %29 = vst.msk [vmem:[#allocation2 + $0x1c] sm:$0xf] %vm26, %v24
  %s30 = scalar_lea.vmem %s0, 32
  %v31 = vld [vmem:[%s30] sm:$0xff]
  %v32 = vld [vmem:[%s30 + $0x8] sm:$0xf]
  %v33 = vld [vmem:[%s30 + $0x10] sm:$0xff]
  %v34 = vld [vmem:[%s30 + $0x18] sm:$0xf]
  %39 = vrot.lane.b32.xlu0 %v31, 64
  %v40 = vpop.permute.xlu0 %39
  %41 = vrot.lane.b32.xlu0 %v32, 64
  %v42 = vpop.permute.xlu0 %41
  %43 = vrot.lane.b32.xlu0 %v33, 64
  %v44 = vpop.permute.xlu0 %43
  %45 = vrot.lane.b32.xlu0 %v34, 64
  %v46 = vpop.permute.xlu0 %45
  %v47 = vrot.slane %v40, 4
  %v48 = vrot.slane %v44, 4
  %vm49 = vcmask 523264
  %v50 = vsel %vm49, %v47, %v40
  %v51 = vsel %vm49, %v47, %v42
  %v52 = vsel %vm49, %v48, %v44
  %v53 = vsel %vm49, %v48, %v46
  %vm58 = vcmask 1043968
  %vm59 = vcmask 1047556
  %vm60 = vmor %vm59, %vm58
  %61 = vst.msk [vmem:[#allocation2 + $0x8] sm:$0xff] %vm60, %v50
  %62 = vst [vmem:[#allocation2 + $0x10] sm:$0xf] %v51
  %63 = vst.msk [vmem:[#allocation2 + $0x1c] sm:$0xff] %vm60, %v52
  %64 = vst [vmem:[#allocation2 + $0x24] sm:$0xf] %v53
  %v65 = vld [vmem:[%s0] sm:$0xff]
  %v66 = vld [vmem:[%s0 + $0x8] sm:$0xf]
  %v67 = vld [vmem:[%s0 + $0x10] sm:$0xff]
  %v68 = vld [vmem:[%s0 + $0x18] sm:$0xf]
  %73 = vrot.lane.b32.xlu0 %v65, 126
  %v74 = vpop.permute.xlu0 %73
  %75 = vrot.lane.b32.xlu0 %v66, 126
  %v76 = vpop.permute.xlu0 %75
  %77 = vrot.lane.b32.xlu0 %v67, 126
  %v78 = vpop.permute.xlu0 %77
  %79 = vrot.lane.b32.xlu0 %v68, 126
  %v80 = vpop.permute.xlu0 %79
  %v81 = vrot.slane %v74, 4
  %v82 = vrot.slane %v76, 4
  %v83 = vrot.slane %v78, 4
  %v84 = vrot.slane %v80, 4
  %vm85 = vcmask 1043456
  %v86 = vsel %vm85, %v81, %v82
  %vm87 = vcmask 1031168
  %v88 = vsel %vm87, %v74, %v86
  %v89 = vsel %vm85, %v83, %v84
  %v90 = vsel %vm87, %v78, %v89
  %95 = vst [vmem:[#allocation2 + $0x28] sm:$0xff] %v88
  %96 = vst.msk [vmem:[#allocation2 + $0x30] sm:$0xf] %vm26, %v76
  %97 = vst [vmem:[#allocation2 + $0x3c] sm:$0xff] %v90
  %98 = vst.msk [vmem:[#allocation2 + $0x44] sm:$0xf] %vm26, %v80
  %v99 = vld [vmem:[%s30] sm:$0xff]
  %v100 = vld [vmem:[%s30 + $0x8] sm:$0xf]
  %v101 = vld [vmem:[%s30 + $0x10] sm:$0xff]
  %v102 = vld [vmem:[%s30 + $0x18] sm:$0xf]
  %107 = vrot.lane.b32.xlu0 %v99, 62
  %v108 = vpop.permute.xlu0 %107
  %109 = vrot.lane.b32.xlu0 %v100, 62
  %v110 = vpop.permute.xlu0 %109
  %111 = vrot.lane.b32.xlu0 %v101, 62
  %v112 = vpop.permute.xlu0 %111
  %113 = vrot.lane.b32.xlu0 %v102, 62
  %v114 = vpop.permute.xlu0 %113
  %v115 = vrot.slane %v108, 4
  %v116 = vrot.slane %v112, 4
  %vm117 = vcmask 506880
  %v118 = vsel %vm117, %v115, %v108
  %v119 = vsel %vm117, %v115, %v110
  %v120 = vsel %vm117, %v116, %v112
  %v121 = vsel %vm117, %v116, %v114
  %126 = vst.msk [vmem:[#allocation2 + $0x30] sm:$0xff] %vm60, %v118
  %127 = vst [vmem:[#allocation2 + $0x38] sm:$0xf] %v119
  %128 = vst.msk [vmem:[#allocation2 + $0x44] sm:$0xff] %vm60, %v120
  %129 = vst [vmem:[#allocation2 + $0x4c] sm:$0xf] %v121
  %v130 = vld [vmem:[%s0] sm:$0xff]
  %v131 = vld [vmem:[%s0 + $0x8] sm:$0xf]
  %v132 = vld [vmem:[%s0 + $0x10] sm:$0xff]
  %v133 = vld [vmem:[%s0 + $0x18] sm:$0xf]
  %138 = vrot.lane.b32.xlu0 %v130, 124
  %v139 = vpop.permute.xlu0 %138
  %140 = vrot.lane.b32.xlu0 %v131, 124
  %v141 = vpop.permute.xlu0 %140
  %142 = vrot.lane.b32.xlu0 %v132, 124
  %v143 = vpop.permute.xlu0 %142
  %144 = vrot.lane.b32.xlu0 %v133, 124
  %v145 = vpop.permute.xlu0 %144
  %v146 = vrot.slane %v139, 4
  %v147 = vrot.slane %v141, 4
  %v148 = vrot.slane %v143, 4
  %v149 = vrot.slane %v145, 4
  %v150 = vsel %vm85, %v146, %v147
  %vm151 = vcmask 1014784
  %v152 = vsel %vm151, %v139, %v150
  %v153 = vsel %vm85, %v148, %v149
  %v154 = vsel %vm151, %v143, %v153
  %159 = vst [vmem:[#allocation2 + $0x50] sm:$0xff] %v152
  %160 = vst.msk [vmem:[#allocation2 + $0x58] sm:$0xf] %vm26, %v141
  %161 = vst [vmem:[#allocation2 + $0x64] sm:$0xff] %v154
  %162 = vst.msk [vmem:[#allocation2 + $0x6c] sm:$0xf] %vm26, %v145
  %v163 = vld [vmem:[%s30] sm:$0xff]
  %v164 = vld [vmem:[%s30 + $0x8] sm:$0xf]
  %v165 = vld [vmem:[%s30 + $0x10] sm:$0xff]
  %v166 = vld [vmem:[%s30 + $0x18] sm:$0xf]
  %171 = vrot.lane.b32.xlu0 %v163, 60
  %v172 = vpop.permute.xlu0 %171
  %173 = vrot.lane.b32.xlu0 %v164, 60
  %v174 = vpop.permute.xlu0 %173
  %175 = vrot.lane.b32.xlu0 %v165, 60
  %v176 = vpop.permute.xlu0 %175
  %177 = vrot.lane.b32.xlu0 %v166, 60
  %v178 = vpop.permute.xlu0 %177
  %v179 = vrot.slane %v172, 4
  %v180 = vrot.slane %v176, 4
  %vm181 = vcmask 490496
  %v182 = vsel %vm181, %v179, %v172
  %v183 = vsel %vm181, %v179, %v174
  %v184 = vsel %vm181, %v180, %v176
  %v185 = vsel %vm181, %v180, %v178
  %190 = vst.msk [vmem:[#allocation2 + $0x58] sm:$0xff] %vm60, %v182
  %191 = vst [vmem:[#allocation2 + $0x60] sm:$0xf] %v183
  %192 = vst.msk [vmem:[#allocation2 + $0x6c] sm:$0xff] %vm60, %v184
  %193 = vst [vmem:[#allocation2 + $0x74] sm:$0xf] %v185
  %v194 = vld [vmem:[%s0] sm:$0xff]
  %v195 = vld [vmem:[%s0 + $0x8] sm:$0xf]
  %v196 = vld [vmem:[%s0 + $0x10] sm:$0xff]
  %v197 = vld [vmem:[%s0 + $0x18] sm:$0xf]
  %202 = vrot.lane.b32.xlu0 %v194, 88
  %v203 = vpop.permute.xlu0 %202
  %204 = vrot.lane.b32.xlu0 %v195, 88
  %v205 = vpop.permute.xlu0 %204
  %206 = vrot.lane.b32.xlu0 %v196, 88
  %v207 = vpop.permute.xlu0 %206
  %208 = vrot.lane.b32.xlu0 %v197, 88
  %v209 = vpop.permute.xlu0 %208
  %v210 = vrot.slane %v203, 4
  %v211 = vrot.slane %v205, 4
  %v212 = vrot.slane %v207, 4
  %v213 = vrot.slane %v209, 4
  %v214 = vsel %vm85, %v210, %v211
  %vm215 = vcmask 719872
  %v216 = vsel %vm215, %v203, %v214
  %v217 = vsel %vm85, %v212, %v213
  %v218 = vsel %vm215, %v207, %v217
  %223 = vst [vmem:[#allocation2 + $0x78] sm:$0xff] %v216
  %224 = vst.msk [vmem:[#allocation2 + $0x80] sm:$0xf] %vm26, %v205
  %225 = vst [vmem:[#allocation2 + $0x8c] sm:$0xff] %v218
  %226 = vst.msk [vmem:[#allocation2 + $0x94] sm:$0xf] %vm26, %v209
  %v227 = vld [vmem:[%s30] sm:$0xff]
  %v228 = vld [vmem:[%s30 + $0x8] sm:$0xf]
  %v229 = vld [vmem:[%s30 + $0x10] sm:$0xff]
  %v230 = vld [vmem:[%s30 + $0x18] sm:$0xf]
  %235 = vrot.lane.b32.xlu0 %v227, 24
  %v236 = vpop.permute.xlu0 %235
  %237 = vrot.lane.b32.xlu0 %v228, 24
  %v238 = vpop.permute.xlu0 %237
  %239 = vrot.lane.b32.xlu0 %v229, 24
  %v240 = vpop.permute.xlu0 %239
  %241 = vrot.lane.b32.xlu0 %v230, 24
  %v242 = vpop.permute.xlu0 %241
  %v243 = vrot.slane %v236, 4
  %v244 = vrot.slane %v240, 4
  %vm245 = vcmask 195584
  %v246 = vsel %vm245, %v243, %v236
  %v247 = vsel %vm245, %v243, %v238
  %v248 = vsel %vm245, %v244, %v240
  %v249 = vsel %vm245, %v244, %v242
  %254 = vst.msk [vmem:[#allocation2 + $0x80] sm:$0xff] %vm60, %v246
  %255 = vst [vmem:[#allocation2 + $0x88] sm:$0xf] %v247
  %256 = vst.msk [vmem:[#allocation2 + $0x94] sm:$0xff] %vm60, %v248
  %257 = vst [vmem:[#allocation2 + $0x9c] sm:$0xf] %v249
  %v258 = vld [vmem:[%s0] sm:$0xff]
  %v259 = vld [vmem:[%s0 + $0x8] sm:$0xf]
  %v260 = vld [vmem:[%s0 + $0x10] sm:$0xff]
  %v261 = vld [vmem:[%s0 + $0x18] sm:$0xf]
  %266 = vrot.lane.b32.xlu0 %v258, 86
  %v267 = vpop.permute.xlu0 %266
  %268 = vrot.lane.b32.xlu0 %v259, 86
  %v269 = vpop.permute.xlu0 %268
  %270 = vrot.lane.b32.xlu0 %v260, 86
  %v271 = vpop.permute.xlu0 %270
  %272 = vrot.lane.b32.xlu0 %v261, 86
  %v273 = vpop.permute.xlu0 %272
  %v274 = vrot.slane %v267, 4
  %v275 = vrot.slane %v269, 4
  %v276 = vrot.slane %v271, 4
  %v277 = vrot.slane %v273, 4
  %v278 = vsel %vm85, %v274, %v275
  %vm279 = vcmask 703488
  %v280 = vsel %vm279, %v267, %v278
  %v281 = vsel %vm85, %v276, %v277
  %v282 = vsel %vm279, %v271, %v281
  %287 = vst [vmem:[#allocation2 + $0xa0] sm:$0xff] %v280
  %288 = vst.msk [vmem:[#allocation2 + $0xa8] sm:$0xf] %vm26, %v269
  %289 = vst [vmem:[#allocation2 + $0xb4] sm:$0xff] %v282
  %290 = vst.msk [vmem:[#allocation2 + $0xbc] sm:$0xf] %vm26, %v273
  %v291 = vld [vmem:[%s30] sm:$0xff]
  %v292 = vld [vmem:[%s30 + $0x8] sm:$0xf]
  %v293 = vld [vmem:[%s30 + $0x10] sm:$0xff]
  %v294 = vld [vmem:[%s30 + $0x18] sm:$0xf]
  %299 = vrot.lane.b32.xlu0 %v291, 22
  %v300 = vpop.permute.xlu0 %299
  %301 = vrot.lane.b32.xlu0 %v292, 22
  %v302 = vpop.permute.xlu0 %301
  %303 = vrot.lane.b32.xlu0 %v293, 22
  %v304 = vpop.permute.xlu0 %303
  %305 = vrot.lane.b32.xlu0 %v294, 22
  %v306 = vpop.permute.xlu0 %305
  %v307 = vrot.slane %v300, 4
  %v308 = vrot.slane %v304, 4
  %vm309 = vcmask 179200
  %v310 = vsel %vm309, %v307, %v300
  %v311 = vsel %vm309, %v307, %v302
  %v312 = vsel %vm309, %v308, %v304
  %v313 = vsel %vm309, %v308, %v306
  %318 = vst.msk [vmem:[#allocation2 + $0xa8] sm:$0xff] %vm60, %v310
  %319 = vst [vmem:[#allocation2 + $0xb0] sm:$0xf] %v311
  %320 = vst.msk [vmem:[#allocation2 + $0xbc] sm:$0xff] %vm60, %v312
  %321 = vst [vmem:[#allocation2 + $0xc4] sm:$0xf] %v313
  %v322 = vld [vmem:[%s0] sm:$0xff]
  %v323 = vld [vmem:[%s0 + $0x8] sm:$0xf]
  %v324 = vld [vmem:[%s0 + $0x10] sm:$0xff]
  %v325 = vld [vmem:[%s0 + $0x18] sm:$0xf]
  %330 = vrot.lane.b32.xlu0 %v322, 84
  %v331 = vpop.permute.xlu0 %330
  %332 = vrot.lane.b32.xlu0 %v323, 84
  %v333 = vpop.permute.xlu0 %332
  %334 = vrot.lane.b32.xlu0 %v324, 84
  %v335 = vpop.permute.xlu0 %334
  %336 = vrot.lane.b32.xlu0 %v325, 84
  %v337 = vpop.permute.xlu0 %336
  %v338 = vrot.slane %v331, 4
  %v339 = vrot.slane %v333, 4
  %v340 = vrot.slane %v335, 4
  %v341 = vrot.slane %v337, 4
  %v342 = vsel %vm85, %v338, %v339
  %vm343 = vcmask 687104
  %v344 = vsel %vm343, %v331, %v342
  %v345 = vsel %vm85, %v340, %v341
  %v346 = vsel %vm343, %v335, %v345
  %351 = vst [vmem:[#allocation2 + $0xc8] sm:$0xff] %v344
  %352 = vst.msk [vmem:[#allocation2 + $0xd0] sm:$0xf] %vm26, %v333
  %353 = vst [vmem:[#allocation2 + $0xdc] sm:$0xff] %v346
  %354 = vst.msk [vmem:[#allocation2 + $0xe4] sm:$0xf] %vm26, %v337
  %v355 = vld [vmem:[%s30] sm:$0xff]
  %v356 = vld [vmem:[%s30 + $0x8] sm:$0xf]
  %v357 = vld [vmem:[%s30 + $0x10] sm:$0xff]
  %v358 = vld [vmem:[%s30 + $0x18] sm:$0xf]
  %363 = vrot.lane.b32.xlu0 %v355, 20
  %v364 = vpop.permute.xlu0 %363
  %365 = vrot.lane.b32.xlu0 %v356, 20
  %v366 = vpop.permute.xlu0 %365
  %367 = vrot.lane.b32.xlu0 %v357, 20
  %v368 = vpop.permute.xlu0 %367
  %369 = vrot.lane.b32.xlu0 %v358, 20
  %v370 = vpop.permute.xlu0 %369
  %v371 = vrot.slane %v364, 4
  %v372 = vrot.slane %v368, 4
  %vm373 = vcmask 162816
  %v374 = vsel %vm373, %v371, %v364
  %v375 = vsel %vm373, %v371, %v366
  %v376 = vsel %vm373, %v372, %v368
  %v377 = vsel %vm373, %v372, %v370
  %382 = vst.msk [vmem:[#allocation2 + $0xd0] sm:$0xff] %vm60, %v374
  %383 = vst [vmem:[#allocation2 + $0xd8] sm:$0xf] %v375
  %384 = vst.msk [vmem:[#allocation2 + $0xe4] sm:$0xff] %vm60, %v376
  %385 = vst [vmem:[#allocation2 + $0xec] sm:$0xf] %v377
  %v386 = vld [vmem:[%s0] sm:$0xff]
  %v387 = vld [vmem:[%s0 + $0x8] sm:$0xff]
  %v388 = vld [vmem:[%s0 + $0x10] sm:$0xff]
  %v389 = vld [vmem:[%s0 + $0x18] sm:$0xff]
  %394 = vrot.lane.b32.xlu0 %v386, 48
  %v395 = vpop.permute.xlu0 %394
  %396 = vrot.lane.b32.xlu0 %v387, 48
  %v397 = vpop.permute.xlu0 %396
  %398 = vrot.lane.b32.xlu0 %v388, 48
  %v399 = vpop.permute.xlu0 %398
  %400 = vrot.lane.b32.xlu0 %v389, 48
  %v401 = vpop.permute.xlu0 %400
  %v402 = vrot.slane %v395, 4
  %v403 = vrot.slane %v397, 4
  %v404 = vrot.slane %v399, 4
  %v405 = vrot.slane %v401, 4
  %v406 = vsel %vm85, %v402, %v403
  %vm407 = vcmask 392192
  %v408 = vsel %vm407, %v395, %v406
  %v409 = vsel %vm407, %v397, %v403
  %v410 = vsel %vm85, %v404, %v405
  %v411 = vsel %vm407, %v399, %v410
  %v412 = vsel %vm407, %v401, %v405
  %417 = vst [vmem:[#allocation2 + $0xf0] sm:$0xff] %v408
  %418 = vst.msk [vmem:[#allocation2 + $0xf8] sm:$0xf] %vm26, %v409
  %419 = vst [vmem:[#allocation2 + $0x104] sm:$0xff] %v411
  %420 = vst.msk [vmem:[#allocation2 + $0x10c] sm:$0xf] %vm26, %v412
  %v421 = vld [vmem:[%s30] sm:$0xff]
  %v422 = vld [vmem:[%s30 + $0x8] sm:$0xff]
  %v423 = vld [vmem:[%s30 + $0x10] sm:$0xff]
  %v424 = vld [vmem:[%s30 + $0x18] sm:$0xff]
  %429 = vrot.lane.b32.xlu0 %v421, 112
  %v430 = vpop.permute.xlu0 %429
  %431 = vrot.lane.b32.xlu0 %v422, 112
  %v432 = vpop.permute.xlu0 %431
  %433 = vrot.lane.b32.xlu0 %v423, 112
  %v434 = vpop.permute.xlu0 %433
  %435 = vrot.lane.b32.xlu0 %v424, 112
  %v436 = vpop.permute.xlu0 %435
  %v437 = vrot.slane %v430, 4
  %v438 = vrot.slane %v432, 4
  %v439 = vrot.slane %v434, 4
  %v440 = vrot.slane %v436, 4
  %v441 = vsel %vm85, %v437, %v438
  %vm442 = vcmask 916480
  %v443 = vsel %vm442, %v430, %v441
  %v444 = vsel %vm442, %v432, %v438
  %v445 = vsel %vm85, %v439, %v440
  %v446 = vsel %vm442, %v434, %v445
  %v447 = vsel %vm442, %v436, %v440
  %452 = vst.msk [vmem:[#allocation2 + $0xf8] sm:$0xff] %vm60, %v443
  %453 = vst [vmem:[#allocation2 + $0x100] sm:$0xf] %v444
  %454 = vst.msk [vmem:[#allocation2 + $0x10c] sm:$0xff] %vm60, %v446
  %455 = vst [vmem:[#allocation2 + $0x114] sm:$0xf] %v447
  %v456 = vld [vmem:[%s0] sm:$0xff]
  %v457 = vld [vmem:[%s0 + $0x8] sm:$0xff]
  %v458 = vld [vmem:[%s0 + $0x10] sm:$0xff]
  %v459 = vld [vmem:[%s0 + $0x18] sm:$0xff]
  %464 = vrot.lane.b32.xlu0 %v456, 46
  %v465 = vpop.permute.xlu0 %464
  %466 = vrot.lane.b32.xlu0 %v457, 46
  %v467 = vpop.permute.xlu0 %466
  %468 = vrot.lane.b32.xlu0 %v458, 46
  %v469 = vpop.permute.xlu0 %468
  %470 = vrot.lane.b32.xlu0 %v459, 46
  %v471 = vpop.permute.xlu0 %470
  %v472 = vrot.slane %v465, 4
  %v473 = vrot.slane %v467, 4
  %v474 = vrot.slane %v469, 4
  %v475 = vrot.slane %v471, 4
  %v476 = vsel %vm85, %v472, %v473
  %vm477 = vcmask 375808
  %v478 = vsel %vm477, %v465, %v476
  %v479 = vsel %vm477, %v467, %v473
  %v480 = vsel %vm85, %v474, %v475
  %v481 = vsel %vm477, %v469, %v480
  %v482 = vsel %vm477, %v471, %v475
  %487 = vst [vmem:[#allocation2 + $0x118] sm:$0xff] %v478
  %488 = vst.msk [vmem:[#allocation2 + $0x120] sm:$0xf] %vm26, %v479
  %489 = vst [vmem:[#allocation2 + $0x12c] sm:$0xff] %v481
  %490 = vst.msk [vmem:[#allocation2 + $0x134] sm:$0xf] %vm26, %v482
  %v491 = vld [vmem:[%s30] sm:$0xff]
  %v492 = vld [vmem:[%s30 + $0x8] sm:$0xff]
  %v493 = vld [vmem:[%s30 + $0x10] sm:$0xff]
  %v494 = vld [vmem:[%s30 + $0x18] sm:$0xff]
  %499 = vrot.lane.b32.xlu0 %v491, 110
  %v500 = vpop.permute.xlu0 %499
  %501 = vrot.lane.b32.xlu0 %v492, 110
  %v502 = vpop.permute.xlu0 %501
  %503 = vrot.lane.b32.xlu0 %v493, 110
  %v504 = vpop.permute.xlu0 %503
  %505 = vrot.lane.b32.xlu0 %v494, 110
  %v506 = vpop.permute.xlu0 %505
  %v507 = vrot.slane %v500, 4
  %v508 = vrot.slane %v502, 4
  %v509 = vrot.slane %v504, 4
  %v510 = vrot.slane %v506, 4
  %v511 = vsel %vm85, %v507, %v508
  %vm512 = vcmask 900096
  %v513 = vsel %vm512, %v500, %v511
  %v514 = vsel %vm512, %v502, %v508
  %v515 = vsel %vm85, %v509, %v510
  %v516 = vsel %vm512, %v504, %v515
  %v517 = vsel %vm512, %v506, %v510
  %522 = vst.msk [vmem:[#allocation2 + $0x120] sm:$0xff] %vm60, %v513
  %523 = vst [vmem:[#allocation2 + $0x128] sm:$0xf] %v514
  %524 = vst.msk [vmem:[#allocation2 + $0x134] sm:$0xff] %vm60, %v516
  %525 = vst [vmem:[#allocation2 + $0x13c] sm:$0xf] %v517
  %v526 = vld [vmem:[%s0] sm:$0xff]
  %v527 = vld [vmem:[%s0 + $0x8] sm:$0xff]
  %v528 = vld [vmem:[%s0 + $0x10] sm:$0xff]
  %v529 = vld [vmem:[%s0 + $0x18] sm:$0xff]
  %534 = vrot.lane.b32.xlu0 %v526, 44
  %v535 = vpop.permute.xlu0 %534
  %536 = vrot.lane.b32.xlu0 %v527, 44
  %v537 = vpop.permute.xlu0 %536
  %538 = vrot.lane.b32.xlu0 %v528, 44
  %v539 = vpop.permute.xlu0 %538
  %540 = vrot.lane.b32.xlu0 %v529, 44
  %v541 = vpop.permute.xlu0 %540
  %v542 = vrot.slane %v535, 4
  %v543 = vrot.slane %v537, 4
  %v544 = vrot.slane %v539, 4
  %v545 = vrot.slane %v541, 4
  %v546 = vsel %vm85, %v542, %v543
  %vm547 = vcmask 359424
  %v548 = vsel %vm547, %v535, %v546
  %v549 = vsel %vm547, %v537, %v543
  %v550 = vsel %vm85, %v544, %v545
  %v551 = vsel %vm547, %v539, %v550
  %v552 = vsel %vm547, %v541, %v545
  %557 = vst [vmem:[#allocation2 + $0x140] sm:$0xff] %v548
  %558 = vst.msk [vmem:[#allocation2 + $0x148] sm:$0xf] %vm26, %v549
  %559 = vst [vmem:[#allocation2 + $0x154] sm:$0xff] %v551
  %560 = vst.msk [vmem:[#allocation2 + $0x15c] sm:$0xf] %vm26, %v552
  %v561 = vld [vmem:[%s30] sm:$0xff]
  %v562 = vld [vmem:[%s30 + $0x8] sm:$0xff]
  %v563 = vld [vmem:[%s30 + $0x10] sm:$0xff]
  %v564 = vld [vmem:[%s30 + $0x18] sm:$0xff]
  %569 = vrot.lane.b32.xlu0 %v561, 108
  %v570 = vpop.permute.xlu0 %569
  %571 = vrot.lane.b32.xlu0 %v562, 108
  %v572 = vpop.permute.xlu0 %571
  %573 = vrot.lane.b32.xlu0 %v563, 108
  %v574 = vpop.permute.xlu0 %573
  %575 = vrot.lane.b32.xlu0 %v564, 108
  %v576 = vpop.permute.xlu0 %575
  %v577 = vrot.slane %v570, 4
  %v578 = vrot.slane %v572, 4
  %v579 = vrot.slane %v574, 4
  %v580 = vrot.slane %v576, 4
  %v581 = vsel %vm85, %v577, %v578
  %vm582 = vcmask 883712
  %v583 = vsel %vm582, %v570, %v581
  %v584 = vsel %vm582, %v572, %v578
  %v585 = vsel %vm85, %v579, %v580
  %v586 = vsel %vm582, %v574, %v585
  %v587 = vsel %vm582, %v576, %v580
  %592 = vst.msk [vmem:[#allocation2 + $0x148] sm:$0xff] %vm60, %v583
  %593 = vst [vmem:[#allocation2 + $0x150] sm:$0xf] %v584
  %594 = vst.msk [vmem:[#allocation2 + $0x15c] sm:$0xff] %vm60, %v586
  %595 = vst [vmem:[#allocation2 + $0x164] sm:$0xf] %v587
  %v596 = vld [vmem:[%s1] sm:$0xff]
  %v597 = vld [vmem:[#allocation2] sm:$0xff]
  %v598 = vld [vmem:[#allocation2 + $0x8] sm:$0xff]
  %v599 = vld [vmem:[#allocation2 + $0x10] sm:$0xf]
  %v600 = vld [vmem:[#allocation2 + $0x14] sm:$0xff]
  %v601 = vld [vmem:[#allocation2 + $0x1c] sm:$0xff]
  %v602 = vld [vmem:[#allocation2 + $0x24] sm:$0xf]
  %v603 = vld [vmem:[#allocation2 + $0x28] sm:$0xff]
  %v604 = vld [vmem:[#allocation2 + $0x30] sm:$0xff]
  %v605 = vld [vmem:[#allocation2 + $0x38] sm:$0xf]
  %v606 = vld [vmem:[#allocation2 + $0x3c] sm:$0xff]
  %v607 = vld [vmem:[#allocation2 + $0x44] sm:$0xff]
  %v608 = vld [vmem:[#allocation2 + $0x4c] sm:$0xf]
  %v609 = vld [vmem:[#allocation2 + $0x50] sm:$0xff]
  %v610 = vld [vmem:[#allocation2 + $0x58] sm:$0xff]
  %v611 = vld [vmem:[#allocation2 + $0x60] sm:$0xf]
  %v612 = vld [vmem:[#allocation2 + $0x64] sm:$0xff]
  %v613 = vld [vmem:[#allocation2 + $0x6c] sm:$0xff]
  %v614 = vld [vmem:[#allocation2 + $0x74] sm:$0xf]
  %v615 = vld [vmem:[#allocation2 + $0x78] sm:$0xff]
  %v616 = vld [vmem:[#allocation2 + $0x80] sm:$0xff]
  %v617 = vld [vmem:[#allocation2 + $0x88] sm:$0xf]
  %v618 = vld [vmem:[#allocation2 + $0x8c] sm:$0xff]
  %v619 = vld [vmem:[#allocation2 + $0x94] sm:$0xff]
  %v620 = vld [vmem:[#allocation2 + $0x9c] sm:$0xf]
  %v621 = vld [vmem:[#allocation2 + $0xa0] sm:$0xff]
  %v622 = vld [vmem:[#allocation2 + $0xa8] sm:$0xff]
  %v623 = vld [vmem:[#allocation2 + $0xb0] sm:$0xf]
  %v624 = vld [vmem:[#allocation2 + $0xb4] sm:$0xff]
  %v625 = vld [vmem:[#allocation2 + $0xbc] sm:$0xff]
  %v626 = vld [vmem:[#allocation2 + $0xc4] sm:$0xf]
  %v627 = vld [vmem:[#allocation2 + $0xc8] sm:$0xff]
  %v628 = vld [vmem:[#allocation2 + $0xd0] sm:$0xff]
  %v629 = vld [vmem:[#allocation2 + $0xd8] sm:$0xf]
  %v630 = vld [vmem:[#allocation2 + $0xdc] sm:$0xff]
  %v631 = vld [vmem:[#allocation2 + $0xe4] sm:$0xff]
  %v632 = vld [vmem:[#allocation2 + $0xec] sm:$0xf]
  %v633 = vld [vmem:[#allocation2 + $0xf0] sm:$0xff]
  %v634 = vld [vmem:[#allocation2 + $0xf8] sm:$0xff]
  %v635 = vld [vmem:[#allocation2 + $0x100] sm:$0xf]
  %v636 = vld [vmem:[#allocation2 + $0x104] sm:$0xff]
  %v637 = vld [vmem:[#allocation2 + $0x10c] sm:$0xff]
  %v638 = vld [vmem:[#allocation2 + $0x114] sm:$0xf]
  %v639 = vld [vmem:[#allocation2 + $0x118] sm:$0xff]
  %v640 = vld [vmem:[#allocation2 + $0x120] sm:$0xff]
  %v641 = vld [vmem:[#allocation2 + $0x128] sm:$0xf]
  %v642 = vld [vmem:[#allocation2 + $0x12c] sm:$0xff]
  %v643 = vld [vmem:[#allocation2 + $0x134] sm:$0xff]
  %v644 = vld [vmem:[#allocation2 + $0x13c] sm:$0xf]
  %v645 = vld [vmem:[#allocation2 + $0x140] sm:$0xff]
  %v646 = vld [vmem:[#allocation2 + $0x148] sm:$0xff]
  %v647 = vld [vmem:[#allocation2 + $0x150] sm:$0xf]
  %v648 = vld [vmem:[#allocation2 + $0x154] sm:$0xff]
  %v649 = vld [vmem:[#allocation2 + $0x15c] sm:$0xff]
  %v650 = vld [vmem:[#allocation2 + $0x164] sm:$0xf]
  %v652 = vunpack.c.l.b16 %v596
  %v653 = vunpack.c.h.b16 %v596
  %v654 = vpack.c.b16 %v652, %v652
  %v655 = vpack.c.b16 %v653, %v653
  %v711 = vunpack.c.l.b16 %v597
  %v712 = vunpack.c.h.b16 %v597
  %v713 = vunpack.c.l.b16 %v598
  %v714 = vunpack.c.h.b16 %v598
  %v715 = vunpack.c.l.b16 %v599
  %v716 = vunpack.c.l.b16 %v600
  %v717 = vunpack.c.h.b16 %v600
  %v718 = vunpack.c.l.b16 %v601
  %v719 = vunpack.c.h.b16 %v601
  %v720 = vunpack.c.l.b16 %v602
  %v721 = vunpack.c.l.b16 %v603
  %v722 = vunpack.c.h.b16 %v603
  %v723 = vunpack.c.l.b16 %v604
  %v724 = vunpack.c.h.b16 %v604
  %v725 = vunpack.c.l.b16 %v605
  %v726 = vunpack.c.l.b16 %v606
  %v727 = vunpack.c.h.b16 %v606
  %v728 = vunpack.c.l.b16 %v607
  %v729 = vunpack.c.h.b16 %v607
  %v730 = vunpack.c.l.b16 %v608
  %v731 = vunpack.c.l.b16 %v609
  %v732 = vunpack.c.h.b16 %v609
  %v733 = vunpack.c.l.b16 %v610
  %v734 = vunpack.c.h.b16 %v610
  %v735 = vunpack.c.l.b16 %v611
  %v736 = vunpack.c.l.b16 %v612
  %v737 = vunpack.c.h.b16 %v612
  %v738 = vunpack.c.l.b16 %v613
  %v739 = vunpack.c.h.b16 %v613
  %v740 = vunpack.c.l.b16 %v614
  %v741 = vunpack.c.l.b16 %v615
  %v742 = vunpack.c.h.b16 %v615
  %v743 = vunpack.c.l.b16 %v616
  %v744 = vunpack.c.h.b16 %v616
  %v745 = vunpack.c.l.b16 %v617
  %v746 = vunpack.c.l.b16 %v618
  %v747 = vunpack.c.h.b16 %v618
  %v748 = vunpack.c.l.b16 %v619
  %v749 = vunpack.c.h.b16 %v619
  %v750 = vunpack.c.l.b16 %v620
  %v751 = vunpack.c.l.b16 %v621
  %v752 = vunpack.c.h.b16 %v621
  %v753 = vunpack.c.l.b16 %v622
  %v754 = vunpack.c.h.b16 %v622
  %v755 = vunpack.c.l.b16 %v623
  %v756 = vunpack.c.l.b16 %v624
  %v757 = vunpack.c.h.b16 %v624
  %v758 = vunpack.c.l.b16 %v625
  %v759 = vunpack.c.h.b16 %v625
  %v760 = vunpack.c.l.b16 %v626
  %v761 = vunpack.c.l.b16 %v627
  %v762 = vunpack.c.h.b16 %v627
  %v763 = vunpack.c.l.b16 %v628
  %v764 = vunpack.c.h.b16 %v628
  %v765 = vunpack.c.l.b16 %v629
  %v766 = vunpack.c.l.b16 %v630
  %v767 = vunpack.c.h.b16 %v630
  %v768 = vunpack.c.l.b16 %v631
  %v769 = vunpack.c.h.b16 %v631
  %v770 = vunpack.c.l.b16 %v632
  %v771 = vunpack.c.l.b16 %v633
  %v772 = vunpack.c.h.b16 %v633
  %v773 = vunpack.c.l.b16 %v634
  %v774 = vunpack.c.h.b16 %v634
  %v775 = vunpack.c.l.b16 %v635
  %v776 = vunpack.c.l.b16 %v636
  %v777 = vunpack.c.h.b16 %v636
  %v778 = vunpack.c.l.b16 %v637
  %v779 = vunpack.c.h.b16 %v637
  %v780 = vunpack.c.l.b16 %v638
  %v781 = vunpack.c.l.b16 %v639
  %v782 = vunpack.c.h.b16 %v639
  %v783 = vunpack.c.l.b16 %v640
  %v784 = vunpack.c.h.b16 %v640
  %v785 = vunpack.c.l.b16 %v641
  %v786 = vunpack.c.l.b16 %v642
  %v787 = vunpack.c.h.b16 %v642
  %v788 = vunpack.c.l.b16 %v643
  %v789 = vunpack.c.h.b16 %v643
  %v790 = vunpack.c.l.b16 %v644
  %v791 = vunpack.c.l.b16 %v645
  %v792 = vunpack.c.h.b16 %v645
  %v793 = vunpack.c.l.b16 %v646
  %v794 = vunpack.c.h.b16 %v646
  %v795 = vunpack.c.l.b16 %v647
  %v796 = vunpack.c.l.b16 %v648
  %v797 = vunpack.c.h.b16 %v648
  %v798 = vunpack.c.l.b16 %v649
  %v799 = vunpack.c.h.b16 %v649
  %v800 = vunpack.c.l.b16 %v650
  %v801 = vpack.c.b16 %v716, %v711
  %v802 = vpack.c.b16 %v717, %v712
  %v803 = vpack.c.b16 %v718, %v713
  %v804 = vpack.c.b16 %v719, %v714
  %v805 = vpack.c.b16 %v720, %v715
  %v806 = vpack.c.b16 %v726, %v721
  %v807 = vpack.c.b16 %v727, %v722
  %v808 = vpack.c.b16 %v728, %v723
  %v809 = vpack.c.b16 %v729, %v724
  %v810 = vpack.c.b16 %v730, %v725
  %v811 = vpack.c.b16 %v736, %v731
  %v812 = vpack.c.b16 %v737, %v732
  %v813 = vpack.c.b16 %v738, %v733
  %v814 = vpack.c.b16 %v739, %v734
  %v815 = vpack.c.b16 %v740, %v735
  %v816 = vpack.c.b16 %v746, %v741
  %v817 = vpack.c.b16 %v747, %v742
  %v818 = vpack.c.b16 %v748, %v743
  %v819 = vpack.c.b16 %v749, %v744
  %v820 = vpack.c.b16 %v750, %v745
  %v821 = vpack.c.b16 %v756, %v751
  %v822 = vpack.c.b16 %v757, %v752
  %v823 = vpack.c.b16 %v758, %v753
  %v824 = vpack.c.b16 %v759, %v754
  %v825 = vpack.c.b16 %v760, %v755
  %v826 = vpack.c.b16 %v766, %v761
  %v827 = vpack.c.b16 %v767, %v762
  %v828 = vpack.c.b16 %v768, %v763
  %v829 = vpack.c.b16 %v769, %v764
  %v830 = vpack.c.b16 %v770, %v765
  %v831 = vpack.c.b16 %v776, %v771
  %v832 = vpack.c.b16 %v777, %v772
  %v833 = vpack.c.b16 %v778, %v773
  %v834 = vpack.c.b16 %v779, %v774
  %v835 = vpack.c.b16 %v780, %v775
  %v836 = vpack.c.b16 %v786, %v781
  %v837 = vpack.c.b16 %v787, %v782
  %v838 = vpack.c.b16 %v788, %v783
  %v839 = vpack.c.b16 %v789, %v784
  %v840 = vpack.c.b16 %v790, %v785
  %v841 = vpack.c.b16 %v796, %v791
  %v842 = vpack.c.b16 %v797, %v792
  %v843 = vpack.c.b16 %v798, %v793
  %v844 = vpack.c.b16 %v799, %v794
  %v845 = vpack.c.b16 %v800, %v795
  %vm891 = vcmask 130048
  %v893 = vsel %vm891, %v655, 0
  %895 = vmatpush.bf16.msra.mxu0 %v836
  %896 = vmatpush.bf16.msra.mxu0 %v831
  %897 = vmatpush.bf16.msra.mxu0 %v826
  %898 = vmatpush.bf16.msra.mxu0 %v821
  %899 = vmatpush.bf16.msra.mxu0 %v816
  %900 = vmatpush.bf16.msra.mxu0 %v811
  %901 = vmatpush.bf16.msra.mxu0 %v806
  %902 = vmatpush.bf16.msra.mxu0 %v801
  %903 = vmatmul.bf16.gmra.mxu0 %v654
  %v904 = vpop.f32.mrf.mxu0
  %v905 = vadd.f32 0.0, %v904
  %v906 = vpop.f32.mrf.mxu0
  %907 = vdwg.mxu0
  %908 = vmatpush.bf16.msra.mxu0 0
  %909 = vmatpush.bf16.msra.mxu0 0
  %910 = vmatpush.bf16.msra.mxu0 0
  %911 = vmatpush.bf16.msra.mxu0 0
  %912 = vmatpush.bf16.msra.mxu0 0
  %913 = vmatpush.bf16.msra.mxu0 0
  %914 = vmatpush.bf16.msra.mxu0 0
  %915 = vmatpush.bf16.msra.mxu0 %v841
  %916 = vmatmul.bf16.gmra.mxu0 %v893
  %v917 = vpop.f32.mrf.mxu0
  %v918 = vadd.f32 %v905, %v917
  %v919 = vpop.f32.mrf.mxu0
  %920 = vdwg.mxu0
  %921 = vmatpush.bf16.msra.mxu0 %v837
  %922 = vmatpush.bf16.msra.mxu0 %v832
  %923 = vmatpush.bf16.msra.mxu0 %v827
  %924 = vmatpush.bf16.msra.mxu0 %v822
  %925 = vmatpush.bf16.msra.mxu0 %v817
  %926 = vmatpush.bf16.msra.mxu0 %v812
  %927 = vmatpush.bf16.msra.mxu0 %v807
  %928 = vmatpush.bf16.msra.mxu0 %v802
  %929 = vmatmul.bf16.gmra.mxu0 %v654
  %v930 = vpop.f32.mrf.mxu0
  %v931 = vadd.f32 0.0, %v930
  %v932 = vpop.f32.mrf.mxu0
  %933 = vdwg.mxu0
  %934 = vmatpush.bf16.msra.mxu0 0
  %935 = vmatpush.bf16.msra.mxu0 0
  %936 = vmatpush.bf16.msra.mxu0 0
  %937 = vmatpush.bf16.msra.mxu0 0
  %938 = vmatpush.bf16.msra.mxu0 0
  %939 = vmatpush.bf16.msra.mxu0 0
  %940 = vmatpush.bf16.msra.mxu0 0
  %941 = vmatpush.bf16.msra.mxu0 %v842
  %942 = vmatmul.bf16.gmra.mxu0 %v893
  %v943 = vpop.f32.mrf.mxu0
  %v944 = vadd.f32 %v931, %v943
  %v945 = vpop.f32.mrf.mxu0
  %946 = vdwg.mxu0
  %947 = vmatpush.bf16.msra.mxu0 %v838
  %948 = vmatpush.bf16.msra.mxu0 %v833
  %949 = vmatpush.bf16.msra.mxu0 %v828
  %950 = vmatpush.bf16.msra.mxu0 %v823
  %951 = vmatpush.bf16.msra.mxu0 %v818
  %952 = vmatpush.bf16.msra.mxu0 %v813
  %953 = vmatpush.bf16.msra.mxu0 %v808
  %954 = vmatpush.bf16.msra.mxu0 %v803
  %955 = vmatmul.bf16.gmra.mxu0 %v654
  %v956 = vpop.f32.mrf.mxu0
  %v957 = vadd.f32 0.0, %v956
  %v958 = vpop.f32.mrf.mxu0
  %959 = vdwg.mxu0
  %960 = vmatpush.bf16.msra.mxu0 0
  %961 = vmatpush.bf16.msra.mxu0 0
  %962 = vmatpush.bf16.msra.mxu0 0
  %963 = vmatpush.bf16.msra.mxu0 0
  %964 = vmatpush.bf16.msra.mxu0 0
  %965 = vmatpush.bf16.msra.mxu0 0
  %966 = vmatpush.bf16.msra.mxu0 0
  %967 = vmatpush.bf16.msra.mxu0 %v843
  %968 = vmatmul.bf16.gmra.mxu0 %v893
  %v969 = vpop.f32.mrf.mxu0
  %v970 = vadd.f32 %v957, %v969
  %v971 = vpop.f32.mrf.mxu0
  %972 = vdwg.mxu0
  %973 = vmatpush.bf16.msra.mxu0 %v839
  %974 = vmatpush.bf16.msra.mxu0 %v834
  %975 = vmatpush.bf16.msra.mxu0 %v829
  %976 = vmatpush.bf16.msra.mxu0 %v824
  %977 = vmatpush.bf16.msra.mxu0 %v819
  %978 = vmatpush.bf16.msra.mxu0 %v814
  %979 = vmatpush.bf16.msra.mxu0 %v809
  %980 = vmatpush.bf16.msra.mxu0 %v804
  %981 = vmatmul.bf16.gmra.mxu0 %v654
  %v982 = vpop.f32.mrf.mxu0
  %v983 = vadd.f32 0.0, %v982
  %v984 = vpop.f32.mrf.mxu0
  %985 = vdwg.mxu0
  %986 = vmatpush.bf16.msra.mxu0 0
  %987 = vmatpush.bf16.msra.mxu0 0
  %988 = vmatpush.bf16.msra.mxu0 0
  %989 = vmatpush.bf16.msra.mxu0 0
  %990 = vmatpush.bf16.msra.mxu0 0
  %991 = vmatpush.bf16.msra.mxu0 0
  %992 = vmatpush.bf16.msra.mxu0 0
  %993 = vmatpush.bf16.msra.mxu0 %v844
  %994 = vmatmul.bf16.gmra.mxu0 %v893
  %v995 = vpop.f32.mrf.mxu0
  %v996 = vadd.f32 %v983, %v995
  %v997 = vpop.f32.mrf.mxu0
  %998 = vdwg.mxu0
  %999 = vmatpush.bf16.msra.mxu0 %v840
  %1000 = vmatpush.bf16.msra.mxu0 %v835
  %1001 = vmatpush.bf16.msra.mxu0 %v830
  %1002 = vmatpush.bf16.msra.mxu0 %v825
  %1003 = vmatpush.bf16.msra.mxu0 %v820
  %1004 = vmatpush.bf16.msra.mxu0 %v815
  %1005 = vmatpush.bf16.msra.mxu0 %v810
  %1006 = vmatpush.bf16.msra.mxu0 %v805
  %1007 = vmatmul.bf16.gmra.mxu0 %v654
  %v1008 = vpop.f32.mrf.mxu0
  %v1009 = vadd.f32 0.0, %v1008
  %v1010 = vpop.f32.mrf.mxu0
  %1011 = vdwg.mxu0
  %1012 = vmatpush.bf16.msra.mxu0 0
  %1013 = vmatpush.bf16.msra.mxu0 0
  %1014 = vmatpush.bf16.msra.mxu0 0
  %1015 = vmatpush.bf16.msra.mxu0 0
  %1016 = vmatpush.bf16.msra.mxu0 0
  %1017 = vmatpush.bf16.msra.mxu0 0
  %1018 = vmatpush.bf16.msra.mxu0 0
  %1019 = vmatpush.bf16.msra.mxu0 %v845
  %1020 = vmatmul.bf16.gmra.mxu0 %v893
  %v1021 = vpop.f32.mrf.mxu0
  %v1022 = vadd.f32 %v1009, %v1021
  %v1023 = vpop.f32.mrf.mxu0
  %1024 = vdwg.mxu0
  %v1025 = vld [vmem:[%s2] sm:$0x1f]
  %v1027 = vperm.slane %v1025, 0
  %v1028 = vperm.slane %v1025, 1
  %v1029 = vperm.slane %v1025, 2
  %v1030 = vperm.slane %v1025, 3
  %v1031 = vperm.slane %v1025, 4
  %v1037 = vmul.f32 %v918, %v1027
  %v1038 = vmul.f32 %v944, %v1028
  %v1039 = vmul.f32 %v970, %v1029
  %v1040 = vmul.f32 %v996, %v1030
  %v1041 = vmul.f32 %v1022, %v1031
  %v1042 = vadd.f32 %v1037, %v1038
  %v1043 = vadd.f32 %v1042, %v1039
  %v1044 = vadd.f32 %v1043, %v1040
  %v1045 = vadd.f32 %v1044, %v1041
  %1046 = vadd.xlane.f32.xlu0 %v1045
  %v1047 = vpop.xlane.xlu0 %1046
  %v1048 = vmul.f32 %v1047, 0.001953125
  %v1049 = vsub.f32 %v918, %v1048
  %v1050 = vsub.f32 %v944, %v1048
  %v1051 = vsub.f32 %v970, %v1048
  %v1052 = vsub.f32 %v996, %v1048
  %v1053 = vsub.f32 %v1022, %v1048
  %v1054 = vmul.f32 %v1049, %v1027
  %v1055 = vmul.f32 %v1050, %v1028
  %v1056 = vmul.f32 %v1051, %v1029
  %v1057 = vmul.f32 %v1052, %v1030
  %v1058 = vmul.f32 %v1053, %v1031
  %v1059 = vmul.f32 %v1054, %v1054
  %v1060 = vmul.f32 %v1055, %v1055
  %v1061 = vmul.f32 %v1056, %v1056
  %v1062 = vmul.f32 %v1057, %v1057
  %v1063 = vmul.f32 %v1058, %v1058
  %v1064 = vadd.f32 %v1059, %v1060
  %v1065 = vadd.f32 %v1064, %v1061
  %v1066 = vadd.f32 %v1065, %v1062
  %v1067 = vadd.f32 %v1066, %v1063
  %1068 = vadd.xlane.f32.xlu0 %v1067
  %v1069 = vpop.xlane.xlu0 %1068
  %v1070 = vmul.f32 %v1069, 0.001953125
  %v1071 = vld [vmem:[%s3] sm:$0xff]
  %v1072 = vadd.f32 %v1070, 1e-05
  %v1073 = vrsqrt.pop %v1072
  %v1074 = vmul.f32 %v1073, %v1072
  %v1075 = vmul.f32 %v1074, %v1073
  %v1076 = vmul.f32 0.5, %v1075
  %v1077 = vsub.f32 1.5, %v1076
  %v1078 = vmul.f32 %v1073, %v1077
  %vm1079 = vweird.f32 %v1072
  %vm1080 = vweird.f32 %v1073
  %vm1081 = vmor %vm1079, %vm1080
  %v1082 = vsel %vm1081, %v1073, %v1078
  %v1083 = vmul.f32 %v1071, %v1082
  %1085 = vset.pattern.permute.xlu0 0
  %1086 = vperm.xlu0 %1085, %v1083
  %v1087 = vpop.permute.xlu0 %1086
  %v1089 = vmul.f32 %v1054, %v1087
  %v1090 = vmul.f32 %v1055, %v1087
  %v1091 = vmul.f32 %v1056, %v1087
  %v1092 = vmul.f32 %v1057, %v1087
  %v1093 = vmul.f32 %v1058, %v1087
  %v1094 = vld [vmem:[%s4] sm:$0xff]
  %1096 = vset.pattern.permute.xlu0 0
  %1097 = vperm.xlu0 %1096, %v1094
  %v1098 = vpop.permute.xlu0 %1097
  %v1100 = vadd.f32 %v1089, %v1098
  %v1101 = vadd.f32 %v1090, %v1098
  %v1102 = vadd.f32 %v1091, %v1098
  %v1103 = vadd.f32 %v1092, %v1098
  %v1104 = vadd.f32 %v1093, %v1098
  %v1105 = vmax.f32 %v1100, 0.0
  %v1106 = vmax.f32 %v1101, 0.0
  %v1107 = vmax.f32 %v1102, 0.0
  %v1108 = vmax.f32 %v1103, 0.0
  %v1109 = vmax.f32 %v1104, 0.0
  %1110 = vst [vmem:[%s5] sm:$0xff] %v1105
  %1111 = vst [vmem:[%s5 + $0x8] sm:$0xff] %v1106
  %1112 = vst [vmem:[%s5 + $0x10] sm:$0xff] %v1107
  %1113 = vst [vmem:[%s5 + $0x18] sm:$0xff] %v1108
  %1114 = vst [vmem:[%s5 + $0x20] sm:$0xff] %v1109
  // Predicated region
  $region22: #{atrous_convolution.1} parent=0 // pred_check
    _
  $region23: #{atrous_convolution.1} parent=0 // pred_check_branch
    %1116 = sbr.rel (0) target = $region25
  $region24: #{atrous_convolution.1} parent=0 // pred_region
    _
  $region25: #{atrous_convolution.1} parent=0 // pred_fallthru
    _
  // Predicated region
  $region26: #{atrous_convolution.1} parent=0 // pred_check
    _
  $region27: #{atrous_convolution.1} parent=0 // pred_check_branch
    %1118 = sbr.rel (0) target = $region29
  $region28: #{atrous_convolution.1} parent=0 // pred_region
    _
  $region29: #{atrous_convolution.1} parent=0 // pred_fallthru
    _

</llo_original>
